<compile_context>
chip_gen: v6e
topology: v6e:2x2x1
jax: 0.10.0
libtpu: 0.0.40
codegen_flags: <defaults>
</compile_context>

<pallas_src>
import jax
import jax.numpy as jnp
from jax.experimental import pallas as pl
from jax.experimental.pallas import tpu as pltpu


_TARGET_BLOCK_BYTES = 4 * 1024 * 1024       # per-input block (~4 MiB)
_VMEM_LIMIT_BYTES = 32 * 1024 * 1024        # explicit scoped-VMEM budget (safe on v5e..v7x)
_SMALL_FALLBACK_BYTES = 4 * 1024 * 1024     # combined scores+targets below this -> plain jnp


def _stable_bce_with_logits(x, z):
    # Numerically stable BCE-with-logits (== F.binary_cross_entropy_with_logits, 'none'):
    #   max(x, 0) - x*z + log(1 + exp(-|x|))
    return jnp.maximum(x, 0.0) - x * z + jnp.log1p(jnp.exp(-jnp.abs(x)))


def _bce_partial_kernel(mask_ref, scores_ref, targets_ref, partial_ref):
    """One grid step: masked BCE partial sum over a (tile_rows, V) row tile."""
    x = scores_ref[...].astype(jnp.float32)    # (tile_rows, V)
    z = targets_ref[...].astype(jnp.float32)   # (tile_rows, V)
    m = mask_ref[...].astype(jnp.float32)      # (tile_rows, 1), zero on padded/invalid rows

    bce = _stable_bce_with_logits(x, z)
    # where() (a select) both applies the mask weight and kills any Inf/NaN coming from
    # the undefined rows the ragged last block over-reads (0 * inf would not).
    contrib = jnp.where(m != 0.0, bce * m, 0.0)

    # Lane-dense, unmasked store of this block's partial sum.
    partial_ref[...] = jnp.full((1, 1, 128), jnp.sum(contrib), dtype=jnp.float32)


def _masked_bce_sum(scores, targets, loss_mask, *, use_pallas=None,
                    target_block_bytes=_TARGET_BLOCK_BYTES):
    """sum(BCEWithLogits(scores, targets) * loss_mask[..., None]) over all elements."""
    B, T, V = scores.shape
    BT = B * T
    itemsize = jnp.dtype(scores.dtype).itemsize

    if use_pallas is None:
        use_pallas = (2 * BT * V * itemsize) >= _SMALL_FALLBACK_BYTES

    mask_f = loss_mask.astype(jnp.float32).reshape(BT, 1)

    if not use_pallas:
        # Tiny-shape fallback: plain XLA beats a single tiny grid step.
        bce = _stable_bce_with_logits(
            scores.astype(jnp.float32).reshape(BT, V),
            targets.astype(jnp.float32).reshape(BT, V))
        return jnp.sum(bce * mask_f)

    scores2 = scores.reshape(BT, V)
    targets2 = targets.reshape(BT, V)

    # Row-tile size: largest sublane multiple with <= target_block_bytes per input block.
    sublane = 16 if itemsize == 2 else 8
    max_rows = max(sublane,
                   ((target_block_bytes // max(1, V * itemsize)) // sublane) * sublane)
    bt_ceil = -(-BT // sublane) * sublane
    tile_rows = min(bt_ceil, max_rows)

    num_blocks = pl.cdiv(BT, tile_rows)
    padded_bt = num_blocks * tile_rows

    # Pad ONLY the tiny (BT, 1) mask with zeros so the ragged last block sees a
    # well-defined mask; the big score/target tensors are never copied or padded.
    mask2 = mask_f
    if padded_bt != BT:
        mask2 = jnp.pad(mask_f, ((0, padded_bt - BT), (0, 0)))

    partials = pl.pallas_call(
        _bce_partial_kernel,
        out_shape=jax.ShapeDtypeStruct((num_blocks, 1, 128), jnp.float32),
        grid_spec=pltpu.PrefetchScalarGridSpec(
            num_scalar_prefetch=0,
            grid=(num_blocks,),
            in_specs=[
                pl.BlockSpec((tile_rows, 1), lambda i: (i, 0)),   # per-tile mask DMA
                pl.BlockSpec((tile_rows, V), lambda i: (i, 0)),   # scores row tile
                pl.BlockSpec((tile_rows, V), lambda i: (i, 0)),   # targets row tile
            ],
            out_specs=pl.BlockSpec((1, 1, 128), lambda i: (i, 0, 0)),
        ),
        compiler_params=pltpu.CompilerParams(
            dimension_semantics=("parallel",),
            vmem_limit_bytes=_VMEM_LIMIT_BYTES,
        ),
    )(mask2, scores2, targets2)

    return jnp.sum(partials[:, 0, 0])


def m4c_decoding_bce_and_region_loss(scores, targets, loss_mask, region, reg_box, *,
                                     use_pallas=None,
                                     target_block_bytes=_TARGET_BLOCK_BYTES):
    assert scores.ndim == 3 and loss_mask.ndim == 2

    bce_sum = _masked_bce_sum(scores, targets, loss_mask,
                              use_pallas=use_pallas,
                              target_block_bytes=target_block_bytes)

    count = jnp.maximum(jnp.sum(loss_mask.astype(jnp.float32)), jnp.float32(1.0))
    loss = bce_sum / count

    # L1 region term (~N*4 floats): plain jnp by design — a dedicated kernel costs more
    # in dispatch + (8,128) tile padding than the computation itself.
    reg_box_sq = jnp.squeeze(reg_box)  # torch.squeeze semantics (drop all size-1 dims)
    rloss = jnp.mean(jnp.abs(region.astype(jnp.float32) - reg_box_sq.astype(jnp.float32)))

    beta = 0.5
    return beta * loss + (1.0 - beta) * rloss


def _reference(scores, targets, loss_mask, region, reg_box):
    x = scores.astype(jnp.float32)
    z = targets.astype(jnp.float32)
    bce = jnp.maximum(x, 0.0) - x * z + jnp.log1p(jnp.exp(-jnp.abs(x)))
    bce = bce * loss_mask.astype(jnp.float32)[:, :, None]
    count = jnp.maximum(jnp.sum(loss_mask.astype(jnp.float32)), 1.0)
    loss = jnp.sum(bce) / count
    rloss = jnp.mean(jnp.abs(region - jnp.squeeze(reg_box)))
    return 0.5 * loss + 0.5 * rloss


if __name__ == "__main__":
    key = jax.random.PRNGKey(0)
    k1, k2, k3, k4, k5 = jax.random.split(key, 5)

    # --- Test 1: small module-consistent shapes, Pallas path forced on -------------
    B, T, V = 2, 8, 32   # batch, decoding steps, answer-vocab size
    N = 8                # number of region boxes

    scores = jax.random.normal(k1, (B, T, V), dtype=jnp.float32)
    targets = (jax.random.uniform(k2, (B, T, V)) > 0.7).astype(jnp.float32)
    loss_mask = (jax.random.uniform(k3, (B, T)) > 0.3).astype(jnp.float32)
    region = jax.random.uniform(k4, (N, 4), dtype=jnp.float32)
    reg_box = jax.random.uniform(k5, (N, 1, 4), dtype=jnp.float32)

    out = m4c_decoding_bce_and_region_loss(scores, targets, loss_mask, region, reg_box,
                                           use_pallas=True)
    out = jax.block_until_ready(out)
    ref = _reference(scores, targets, loss_mask, region, reg_box)
    assert jnp.allclose(out, ref, rtol=1e-5, atol=1e-5), (out, ref)

    # Auto path (tiny shapes -> jnp fallback) must agree too.
    out_auto = jax.block_until_ready(
        m4c_decoding_bce_and_region_loss(scores, targets, loss_mask, region, reg_box))
    assert jnp.allclose(out_auto, ref, rtol=1e-5, atol=1e-5), (out_auto, ref)

    # --- Test 2: ragged BT + multi-block grid (tiny forced block size) --------------
    kk = jax.random.split(jax.random.PRNGKey(1), 5)
    B2, T2, V2 = 2, 13, 128          # BT = 26 -> tile_rows = 8 -> 4 blocks, ragged tail
    scores2 = jax.random.normal(kk[0], (B2, T2, V2), dtype=jnp.float32)
    targets2 = (jax.random.uniform(kk[1], (B2, T2, V2)) > 0.5).astype(jnp.float32)
    loss_mask2 = (jax.random.uniform(kk[2], (B2, T2)) > 0.4).astype(jnp.float32)
    region2 = jax.random.uniform(kk[3], (N, 4), dtype=jnp.float32)
    reg_box2 = jax.random.uniform(kk[4], (N, 1, 4), dtype=jnp.float32)

    out2 = m4c_decoding_bce_and_region_loss(scores2, targets2, loss_mask2, region2, reg_box2,
                                            use_pallas=True, target_block_bytes=4096)
    out2 = jax.block_until_ready(out2)
    ref2 = _reference(scores2, targets2, loss_mask2, region2, reg_box2)
    assert jnp.allclose(out2, ref2, rtol=1e-5, atol=1e-5), (out2, ref2)

    print("KERNEL_OK")
</pallas_src>

<mosaic_0001>
module attributes {stable_mosaic.version = 11 : i64} {
  func.func @_bce_partial_kernel(%arg0: i32, %arg1: memref<16x1xf32, #tpu.memory_space<vmem>>, %arg2: memref<16x32xf32, #tpu.memory_space<vmem>>, %arg3: memref<16x32xf32, #tpu.memory_space<vmem>>, %arg4: memref<1x1x128xf32, #tpu.memory_space<vmem>>) attributes {dimension_semantics = [#tpu.dimension_semantics<parallel>], iteration_bounds = array<i64: 1>, scalar_prefetch = 0 : i64, scratch_operands = 0 : i64, tpu.core_type = #tpu.core_type<tc>, window_params = [{transform_indices = @transform_0, window_bounds = array<i64: 16, 1>}, {transform_indices = @transform_1, window_bounds = array<i64: 16, 32>}, {transform_indices = @transform_2, window_bounds = array<i64: 16, 32>}, {transform_indices = @transform_3, window_bounds = array<i64: 1, 1, 128>}]} {
    %c0 = arith.constant 0 : index
    %c0_0 = arith.constant 0 : index
    %0 = vector.load %arg2[%c0, %c0_0] : memref<16x32xf32, #tpu.memory_space<vmem>>, vector<16x32xf32>
    %c0_1 = arith.constant 0 : index
    %c0_2 = arith.constant 0 : index
    %1 = vector.load %arg3[%c0_1, %c0_2] : memref<16x32xf32, #tpu.memory_space<vmem>>, vector<16x32xf32>
    %c0_3 = arith.constant 0 : index
    %c0_4 = arith.constant 0 : index
    %2 = vector.load %arg1[%c0_3, %c0_4] : memref<16x1xf32, #tpu.memory_space<vmem>>, vector<16x1xf32>
    %cst = arith.constant 0.000000e+00 : f32
    %3 = vector.broadcast %cst : f32 to vector<16x32xf32>
    %4 = arith.maximumf %0, %3 : vector<16x32xf32>
    %5 = arith.mulf %0, %1 : vector<16x32xf32>
    %6 = arith.subf %4, %5 : vector<16x32xf32>
    %7 = math.absf %0 : vector<16x32xf32>
    %cst_5 = arith.constant 0.000000e+00 : f32
    %8 = vector.broadcast %cst_5 : f32 to vector<16x32xf32>
    %9 = arith.subf %8, %7 : vector<16x32xf32>
    %10 = math.exp %9 : vector<16x32xf32>
    %11 = math.log1p %10 : vector<16x32xf32>
    %12 = arith.addf %6, %11 : vector<16x32xf32>
    %cst_6 = arith.constant 0.000000e+00 : f32
    %13 = vector.broadcast %cst_6 : f32 to vector<16x1xf32>
    %14 = arith.cmpf one, %2, %13 : vector<16x1xf32>
    %15 = vector.broadcast %2 : vector<16x1xf32> to vector<16x32xf32>
    %16 = arith.mulf %12, %15 : vector<16x32xf32>
    %cst_7 = arith.constant 0.000000e+00 : f32
    %17 = vector.shape_cast %14 : vector<16x1xi1> to vector<16x1xi1>
    %18 = vector.broadcast %17 : vector<16x1xi1> to vector<16x32xi1>
    %19 = vector.broadcast %cst_7 : f32 to vector<16x32xf32>
    %20 = arith.select %18, %16, %19 : vector<16x32xi1>, vector<16x32xf32>
    %21 = vector.shape_cast %20 : vector<16x32xf32> to vector<1x16x32xf32>
    %cst_8 = arith.constant dense<0.000000e+00> : vector<1xf32>
    %22 = vector.multi_reduction <add>, %21, %cst_8 [1, 2] : vector<1x16x32xf32> to vector<1xf32>
    %23 = vector.shape_cast %22 : vector<1xf32> to vector<1x1x1xf32>
    %24 = vector.extract %23[0, 0, 0] : f32 from vector<1x1x1xf32>
    %25 = vector.broadcast %24 : f32 to vector<1x1x128xf32>
    %c0_9 = arith.constant 0 : index
    %c0_10 = arith.constant 0 : index
    %c0_11 = arith.constant 0 : index
    %26 = vector.load %arg4[%c0_9, %c0_10, %c0_11] : memref<1x1x128xf32, #tpu.memory_space<vmem>>, vector<1x1x128xf32>
    tpu.vector_store %arg4[%c0_9, %c0_10, %c0_11], %25 {strides = array<i32>} : memref<1x1x128xf32, #tpu.memory_space<vmem>>, vector<1x1x128xf32>,
    return
  }
  func.func @transform_0(%arg0: i32) -> (i32, i32) {
    %c0_i32 = arith.constant 0 : i32
    %c0_i32_0 = arith.constant 0 : i32
    return %arg0, %c0_i32 : i32, i32
  }
  func.func @transform_1(%arg0: i32) -> (i32, i32) {
    %c0_i32 = arith.constant 0 : i32
    %c0_i32_0 = arith.constant 0 : i32
    return %arg0, %c0_i32 : i32, i32
  }
  func.func @transform_2(%arg0: i32) -> (i32, i32) {
    %c0_i32 = arith.constant 0 : i32
    %c0_i32_0 = arith.constant 0 : i32
    return %arg0, %c0_i32 : i32, i32
  }
  func.func @transform_3(%arg0: i32) -> (i32, i32, i32) {
    %c0_i32 = arith.constant 0 : i32
    %c0_i32_0 = arith.constant 0 : i32
    %c0_i32_1 = arith.constant 0 : i32
    return %arg0, %c0_i32, %c0_i32_0 : i32, i32, i32
  }
}

</mosaic_0001>

<llo_original>
// kernel: tpu_custom_call.1
$region0: #{tpu_custom_call.1}
  #allocation0 [shape = 'u32[]', space=smem, size = 0x4, offset = 0x4, fixed_abs, tag = 'smem constant byte address 0x4 - core index']
  #allocation1 [shape = 'u32[144,128]{1,0:T(1,128)}', space=vmem, size = 0x12000, scoped, tag = 'internal scratch']
  %s0 = inlined_call_operand.vmem [shape: f32[16,1], index: 0, kind: input, shape index: {}]
  %s1 = inlined_call_operand.vmem [shape: f32[16,32], index: 1, kind: input, shape index: {}]
  %s2 = inlined_call_operand.hbm [shape: f32[16,32], index: 2, kind: input, shape index: {}]
  %s3 = inlined_call_operand.hbm [shape: f32[1,1,128], index: 3, kind: output, shape index: {}]
  %s4 = sld [smem:[#allocation0]]
  $region26: #{tpu_custom_call.1} parent=0
    _
  %s6 = ssub.s32 1, %s4
  %s7 = scalar_select 0, %s6, %s4
  $region1: #{tpu_custom_call.1} parent=0
    #allocation2 [shape = 'u8[8192]{0}', space=vmem, size = 0x2000, scoped, tag = 'input window, operand 2, single buffered']
    #allocation3 [shape = 's32[1]{0}', space=sflag, size = 0x4, scoped, tag = 'scoped memory for tpu_custom_call.1']
    #allocation4 [shape = 's32[1]{0}', space=sflag, size = 0x4, scoped, tag = 'scoped memory for tpu_custom_call.1']
    #allocation5 [shape = 'u8[512]{0}', space=vmem, size = 0x400, scoped, tag = 'output window, operand 0, single buffered']
    %8 = vsyncpa [#allocation3], 0
    %9 = vsyncpa [#allocation4], 0
    // Predicated region
    $region2: #{tpu_custom_call.1} parent=1 // pred_check
      _
    $region3: #{tpu_custom_call.1} parent=1 // pred_check_branch
      %11 = sbr.rel (0) target = $region5
    $region4: #{tpu_custom_call.1} parent=1 // pred_region
      _
    $region5: #{tpu_custom_call.1} parent=1 // pred_fallthru
      _
    // Predicated region
    $region6: #{tpu_custom_call.1} parent=1 // pred_check
      _
    $region7: #{tpu_custom_call.1} parent=1 // pred_check_branch
      %13 = sbr.rel (0) target = $region9
    $region8: #{tpu_custom_call.1} parent=1 // pred_region
      _
    $region9: #{tpu_custom_call.1} parent=1 // pred_fallthru
      _
    // Predicated region
    $region10: #{tpu_custom_call.1} parent=1 // pred_check
      _
    $region11: #{tpu_custom_call.1} parent=1 // pred_check_branch
      %15 = sbr.rel (0) target = $region13
    $region12: #{tpu_custom_call.1} parent=1 // pred_region
      %s17 = ssub.s32 256, 256
      %18 = vsyncadd [#allocation3], %s17
      %s19 = sshll.u32 [#allocation2], 4
      %s20 = int_to_ptr.vmem [resolvable:$true] %s19
      %25 = dma.hbm_to_vmem [thread:$0]  %s2, 256, %s20, [#allocation3], 128, 128, 8
    $region13: #{tpu_custom_call.1} parent=1 // pred_fallthru
      _
    // Predicated region
    $region14: #{tpu_custom_call.1} parent=1 // pred_check
      _
    $region15: #{tpu_custom_call.1} parent=1 // pred_check_branch
      %27 = sbr.rel (0) target = $region17
    $region16: #{tpu_custom_call.1} parent=1 // pred_region
      %28 = dma.done [#allocation3], 256
    $region17: #{tpu_custom_call.1} parent=1 // pred_fallthru
      _
    %v29 = vld [vmem:[%s1] sm:$0xff]
    %v30 = vld [vmem:[%s1 + $0x8] sm:$0xff]
    %v31 = vld [vmem:[#allocation2] sm:$0xff]
    %v32 = vld [vmem:[#allocation2 + $0x8] sm:$0xff]
    %v33 = vld [vmem:[%s0] sm:$0xff]
    %v34 = vld [vmem:[%s0 + $0x8] sm:$0xff]
    %v35 = vmax.f32 %v29, 0.0
    %v36 = vmax.f32 %v30, 0.0
    %v37 = vmul.f32 %v29, %v31
    %v38 = vmul.f32 %v30, %v32
    %v39 = vsub.f32 %v35, %v37
    %v40 = vsub.f32 %v36, %v38
    %v41 = vand.u32 2147483647, %v29
    %v42 = vand.u32 2147483647, %v30
    %v43 = vsub.f32 0.0, %v41
    %v44 = vsub.f32 0.0, %v42
    %v45 = vmul.f32 %v43, 1.442695
    %v46 = vpow.pop %v45
    %v47 = vmul.f32 %v44, 1.442695
    %v48 = vpow.pop %v47
    %v49 = vadd.f32 %v46, 1.0
    %v50 = vlog2.pop %v49
    %v51 = vmul.f32 %v50, 0.6931472
    %v52 = vmul.f32 -0.5, %v46
    %v53 = vadd.f32 %v52, 1.0
    %v54 = vmul.f32 %v53, %v46
    %v55 = vand.u32 2147483647, %v46
    %vm56 = vcmp.lt.f32.partialorder %v55, 0.0004427343
    %v57 = vsel %vm56, %v54, %v51
    %v58 = vadd.f32 %v48, 1.0
    %v59 = vlog2.pop %v58
    %v60 = vmul.f32 %v59, 0.6931472
    %v61 = vmul.f32 -0.5, %v48
    %v62 = vadd.f32 %v61, 1.0
    %v63 = vmul.f32 %v62, %v48
    %v64 = vand.u32 2147483647, %v48
    %vm65 = vcmp.lt.f32.partialorder %v64, 0.0004427343
    %v66 = vsel %vm65, %v63, %v60
    %v67 = vadd.f32 %v39, %v57
    %v68 = vadd.f32 %v40, %v66
    %vm69 = vcmp.ne.f32.partialorder %v33, 0.0
    %vm70 = vcmp.ne.f32.partialorder %v34, 0.0
    %72 = vset.pattern.permute.xlu0 0
    %73 = vperm.xlu0 %72, %v33
    %v74 = vpop.permute.xlu0 %73
    %77 = vset.pattern.permute.xlu0 0
    %78 = vperm.xlu0 %77, %v34
    %v79 = vpop.permute.xlu0 %78
    %v81 = vmul.f32 %v67, %v74
    %v82 = vmul.f32 %v68, %v79
    %v83 = vsel %vm69, 1, 0
    %v84 = vsel %vm70, 1, 0
    %85 = vset.pattern.permute.xlu0 0
    %86 = vperm.xlu0 %85, %v83
    %v87 = vpop.permute.xlu0 %86
    %88 = vset.pattern.permute.xlu0 0
    %89 = vperm.xlu0 %88, %v84
    %v90 = vpop.permute.xlu0 %89
    %vm91 = vcmp.eq.s32.totalorder %v87, 1
    %vm92 = vcmp.eq.s32.totalorder %v90, 1
    %v93 = vsel %vm91, %v81, 0.0
    %v94 = vsel %vm92, %v82, 0.0
    %vm95 = vcmask 261120
    %v96 = vsel %vm95, %v93, 0.0
    %v97 = vsel %vm95, %v94, 0.0
    %v98 = vadd.f32 %v96, %v97
    %99 = vadd.xlane.f32.xlu0 %v98
    %v100 = vpop.xlane.xlu0 %99
    %v101 = vrot.slane %v100, 4
    %v102 = vadd.f32 %v100, %v101
    %v103 = vrot.slane %v102, 2
    %v104 = vadd.f32 %v102, %v103
    %v105 = vrot.slane %v104, 1
    %v106 = vadd.f32 %v104, %v105
    %s107 = vtos %v106
    %v108 = vstv %s107
    %109 = vst [vmem:[#allocation5] sm:$0x1] %v108
    // Predicated region
    $region18: #{tpu_custom_call.1} parent=1 // pred_check
      _
    $region19: #{tpu_custom_call.1} parent=1 // pred_check_branch
      %111 = sbr.rel (0) target = $region21
    $region20: #{tpu_custom_call.1} parent=1 // pred_region
      %s113 = ssub.s32 16, 16
      %114 = vsyncadd [#allocation4], %s113
      %s116 = sshll.u32 [#allocation5], 4
      %s117 = int_to_ptr.vmem [resolvable:$true] %s116
      %119 = dma.vmem_to_hbm [thread:$0]  %s117, 16, %s3, [#allocation4]
    $region21: #{tpu_custom_call.1} parent=1 // pred_fallthru
      _
    // Predicated region
    $region22: #{tpu_custom_call.1} parent=1 // pred_check
      _
    $region23: #{tpu_custom_call.1} parent=1 // pred_check_branch
      %121 = sbr.rel (0) target = $region25
    $region24: #{tpu_custom_call.1} parent=1 // pred_region
      %122 = dma.done [#allocation4], 16
    $region25: #{tpu_custom_call.1} parent=1 // pred_fallthru
      _
    %123 = vsyncpa [#allocation3], 1
    %124 = vsyncpa [#allocation4], 1

</llo_original>
